<compile_context>
chip_gen: v5e
topology: v5e:2x2
jax: 0.10.0
libtpu: 0.0.40
codegen_flags: <defaults>
</compile_context>

<pallas_src>
import functools

import numpy as np

import jax
import jax.numpy as jnp
from jax.experimental import pallas as pl
from jax.experimental.pallas import tpu as pltpu


# ---------------------------------------------------------------------------
# Main kernel: implicit-GEMM "same" conv + InstanceNorm(affine=False) + LeakyReLU.
# ---------------------------------------------------------------------------
def _convblock_same_kernel(w_ref, x_ref, mask_ref, o_ref, patch_ref, *,
                           n_batch, hw, shifts, eps, negative_slope):
    """Fused convblock kernel (stride-1 'same' conv).

    w_ref    : (C_out, K) bf16, K = kh*kw*C_in, tap-major rows ((ki*kw+kj)*C_in + c).
    x_ref    : (C_in, L) f32, lane-dense flattened input, L = n_batch*hw
               (batch-major segments of length hw).
    mask_ref : (kh*kw, L) f32 edge-validity masks (1.0 in-bounds / 0.0 padded).
    o_ref    : (n_batch, C_out, hw), or (C_out, hw) when the batch dim is squeezed
               away by a grid BlockSpec.
    patch_ref: (K, L) f32 VMEM scratch for the in-kernel im2col staging.
    shifts   : static tuple of lane-roll amounts, one per (ki, kj) tap.
    """
    x = x_ref[...]                                     # (C_in, L) f32
    c_in = x.shape[0]

    # In-kernel im2col: each tap is a lane roll of x with out-of-image lanes zeroed
    # by its precomputed mask.  Rolls run on the XLU, the masking multiply on the
    # VPU; no HBM traffic and no 9x patch expansion outside the kernel.
    for k, s in enumerate(shifts):
        xs = x if s == 0 else pltpu.roll(x, shift=s, axis=1)
        m = mask_ref[pl.ds(k, 1), :]                   # (1, L)
        patch_ref[pl.ds(k * c_in, c_in), :] = xs * m

    # One wide, lane-dense MXU issue covering every fused batch element.
    patches = patch_ref[...].astype(jnp.bfloat16)      # (K, L)
    y = jnp.dot(w_ref[...], patches,
                preferred_element_type=jnp.float32)    # (C_out, L) f32

    # Instance norm (affine=False) + LeakyReLU per batch segment.
    # Two-pass variance (centered sum of squares) to avoid cancellation.
    inv_hw = 1.0 / hw
    for b in range(n_batch):
        yb = y[:, b * hw:(b + 1) * hw]                 # static, 128-aligned slice
        mean = jnp.sum(yb, axis=-1, keepdims=True) * inv_hw
        cen = yb - mean
        var = jnp.sum(cen * cen, axis=-1, keepdims=True) * inv_hw
        y_hat = cen * jax.lax.rsqrt(var + eps)
        out_b = jnp.maximum(y_hat, negative_slope * y_hat).astype(o_ref.dtype)
        if len(o_ref.shape) == 3:
            o_ref[b] = out_b
        else:
            o_ref[...] = out_b


def _build_tap_tables(H, W, kh, kw, padding, n_batch):
    """Static lane-roll shifts and edge-validity masks for a stride-1 'same' conv."""
    hw = H * W
    L = n_batch * hw
    hh, ww = np.meshgrid(np.arange(H), np.arange(W), indexing="ij")
    hh = hh.reshape(-1)
    ww = ww.reshape(-1)
    shifts, masks = [], []
    for ki in range(kh):
        for kj in range(kw):
            di, dj = ki - padding, kj - padding
            d = di * W + dj
            shifts.append((-d) % L)                    # roll so out[q] = x[q + d]
            valid = ((hh + di >= 0) & (hh + di < H) &
                     (ww + dj >= 0) & (ww + dj < W)).astype(np.float32)
            masks.append(np.tile(valid, n_batch))      # same mask per batch segment
    return tuple(shifts), np.stack(masks, axis=0)      # (kh*kw, L)


def _tensorcores_per_chip():
    """v7x has 2 TensorCores per chip; v5e/v6e have 1 (best-effort string check)."""
    try:
        kind = jax.devices()[0].device_kind.lower()
    except Exception:
        return 1
    return 2 if ("v7" in kind or "7x" in kind) else 1


# ---------------------------------------------------------------------------
# Fallback kernel for non-'same' configs (previously validated wrapper-im2col path).
# ---------------------------------------------------------------------------
def _convblock_patches_kernel(w_ref, p_ref, o_ref, *, eps, negative_slope):
    # w_ref: (C_out, K) bf16   p_ref: (B, K, HW) bf16   o_ref: (B, C_out, HW) f32
    w = w_ref[...]
    inv_hw = 1.0 / p_ref.shape[2]
    for b in range(p_ref.shape[0]):
        y = jnp.dot(w, p_ref[b], preferred_element_type=jnp.float32)
        mean = jnp.sum(y, axis=-1, keepdims=True) * inv_hw
        cen = y - mean
        var = jnp.sum(cen * cen, axis=-1, keepdims=True) * inv_hw
        y_hat = cen * jax.lax.rsqrt(var + eps)
        o_ref[b] = jnp.maximum(y_hat, negative_slope * y_hat).astype(o_ref.dtype)


def _im2col(x, kh, kw, stride, padding):
    """x: (B, C, H, W) -> (B, C*kh*kw, Ho*Wo), feature index c*(kh*kw)+ki*kw+kj."""
    xp = jnp.pad(x, ((0, 0), (0, 0), (padding, padding), (padding, padding)))
    B, C, Hp, Wp = xp.shape
    Ho = (Hp - kh) // stride + 1
    Wo = (Wp - kw) // stride + 1
    cols = []
    for ki in range(kh):
        for kj in range(kw):
            cols.append(xp[:, :, ki:ki + stride * Ho:stride, kj:kj + stride * Wo:stride])
    col = jnp.stack(cols, axis=2).reshape(B, C * kh * kw, Ho * Wo)
    return col, Ho, Wo


# ---------------------------------------------------------------------------
# Wrapper
# ---------------------------------------------------------------------------
def convblock_forward(x, weight, bias=None, *, stride=1, padding=1, eps=1e-5,
                      negative_slope=0.2, batch_parallel=None):
    """x: (B, C_in, H, W) NCHW; weight: (C_out, C_in, kh, kw); bias: (C_out,).

    Equivalent to Conv2d -> InstanceNorm2d(affine=False) -> LeakyReLU(0.2).
    `bias` is accepted for API parity but unused: a per-channel additive bias is
    cancelled exactly by the affine-free InstanceNorm that follows the conv.
    """
    # TODO(synk): only the norm='in' (InstanceNorm2d, affine=False) convblock variant is
    #   implemented; 'bn' / 'adain' are not translated (the bias elision is only valid
    #   for the affine-free InstanceNorm path).
    del bias
    x = x.astype(jnp.float32)
    weight = weight.astype(jnp.float32)
    B, C_in, H, W = x.shape
    C_out, _, kh, kw = weight.shape
    K = C_in * kh * kw

    same_conv = (stride == 1 and 2 * padding == kh - 1 and 2 * padding == kw - 1)
    if not same_conv:
        # TODO(synk): the implicit-GEMM kernel only covers stride-1 'same' convs; other
        #   configs use the wrapper-im2col fallback kernel below.
        patches, Ho, Wo = _im2col(x, kh, kw, stride, padding)
        w_cm = weight.reshape(C_out, K).astype(jnp.bfloat16)        # channel-major
        kernel = functools.partial(_convblock_patches_kernel, eps=eps,
                                   negative_slope=negative_slope)
        out = pl.pallas_call(
            kernel,
            out_shape=jax.ShapeDtypeStruct((B, C_out, Ho * Wo), x.dtype),
            in_specs=[pl.BlockSpec(memory_space=pltpu.MemorySpace.VMEM)] * 2,
            out_specs=pl.BlockSpec(memory_space=pltpu.MemorySpace.VMEM),
        )(w_cm, patches.astype(jnp.bfloat16))
        return out.reshape(B, C_out, Ho, Wo)

    hw = H * W
    kk = kh * kw
    if batch_parallel is None:
        batch_parallel = _tensorcores_per_chip() > 1

    # Tap-major weight layout matches the in-kernel patch staging order.
    w_tm = weight.transpose(0, 2, 3, 1).reshape(C_out, K).astype(jnp.bfloat16)

    if batch_parallel and B > 1:
        # v7x: one batch element per grid step; "parallel" axis -> one element per
        # TensorCore (on 1-TC chips this is just a short sequential grid).
        shifts, masks = _build_tap_tables(H, W, kh, kw, padding, 1)
        kernel = functools.partial(_convblock_same_kernel, n_batch=1, hw=hw,
                                   shifts=shifts, eps=eps,
                                   negative_slope=negative_slope)
        out = pl.pallas_call(
            kernel,
            out_shape=jax.ShapeDtypeStruct((B, C_out, hw), x.dtype),
            grid=(B,),
            in_specs=[
                pl.BlockSpec((C_out, K), lambda b: (0, 0)),
                pl.BlockSpec((None, C_in, hw), lambda b: (b, 0, 0)),
                pl.BlockSpec((kk, hw), lambda b: (0, 0)),
            ],
            out_specs=pl.BlockSpec((None, C_out, hw), lambda b: (b, 0, 0)),
            scratch_shapes=[pltpu.VMEM((K, hw), jnp.float32)],
            compiler_params=pltpu.CompilerParams(
                dimension_semantics=("parallel",)),
        )(w_tm, x.reshape(B, C_in, hw), jnp.asarray(masks))
    else:
        # v5e/v6e default: batch-fused, gridless, one (C_out,K)@(K,B*HW) MXU issue.
        L = B * hw
        shifts, masks = _build_tap_tables(H, W, kh, kw, padding, B)
        x_fused = x.reshape(B, C_in, hw).transpose(1, 0, 2).reshape(C_in, L)
        kernel = functools.partial(_convblock_same_kernel, n_batch=B, hw=hw,
                                   shifts=shifts, eps=eps,
                                   negative_slope=negative_slope)
        out = pl.pallas_call(
            kernel,
            out_shape=jax.ShapeDtypeStruct((B, C_out, hw), x.dtype),
            in_specs=[pl.BlockSpec(memory_space=pltpu.MemorySpace.VMEM)] * 3,
            out_specs=pl.BlockSpec(memory_space=pltpu.MemorySpace.VMEM),
            scratch_shapes=[pltpu.VMEM((K, L), jnp.float32)],
        )(w_tm, x_fused, jnp.asarray(masks))

    # (B, C_out, HW) -> NCHW: pure reshape, already lane-dense ordered.
    return out.reshape(B, C_out, H, W)


# ---------------------------------------------------------------------------
# Reference + self-test
# ---------------------------------------------------------------------------
def _reference(x, weight, bias, *, stride=1, padding=1, eps=1e-5, slope=0.2):
    y = jax.lax.conv_general_dilated(
        x, weight, window_strides=(stride, stride),
        padding=[(padding, padding), (padding, padding)],
        dimension_numbers=("NCHW", "OIHW", "NCHW"))
    y = y + bias.reshape(1, -1, 1, 1)
    mean = jnp.mean(y, axis=(2, 3), keepdims=True)
    var = jnp.mean((y - mean) ** 2, axis=(2, 3), keepdims=True)
    y = (y - mean) / jnp.sqrt(var + eps)
    return jnp.where(y >= 0, y, slope * y)


if __name__ == "__main__":
    key = jax.random.PRNGKey(0)
    k_x, k_w, k_b = jax.random.split(key, 3)

    B, C_in, H, W = 2, 4, 16, 16
    C_out, kh, kw = 8, 3, 3

    x = jax.random.normal(k_x, (B, C_in, H, W), dtype=jnp.float32)
    fan_in = C_in * kh * kw
    bound = 1.0 / (fan_in ** 0.5)
    weight = jax.random.uniform(k_w, (C_out, C_in, kh, kw), jnp.float32, -bound, bound)
    bias = jax.random.uniform(k_b, (C_out,), jnp.float32, -bound, bound)

    # References: tight check against the same bf16-rounded operands the MXU sees,
    # loose check against the full-f32 math (bf16 quantization gives ~1e-2 deviations).
    ref_bf16 = _reference(x.astype(jnp.bfloat16).astype(jnp.float32),
                          weight.astype(jnp.bfloat16).astype(jnp.float32),
                          bias, stride=1, padding=1)
    ref_f32 = _reference(x, weight, bias, stride=1, padding=1)

    # Auto path (batch-fused on 1-TC chips, batch-parallel grid on v7x).
    out = jax.block_until_ready(convblock_forward(x, weight, bias, stride=1, padding=1))
    assert out.shape == (B, C_out, H, W)
    assert jnp.allclose(out, ref_bf16, rtol=1e-3, atol=1e-3), "auto path vs bf16-input ref"
    assert jnp.allclose(out, ref_f32, rtol=3e-2, atol=3e-2), "auto path vs f32 ref"

    # Explicitly exercise both the batch-fused and the batch-parallel grid paths.
    out_fused = jax.block_until_ready(
        convblock_forward(x, weight, bias, stride=1, padding=1, batch_parallel=False))
    out_grid = jax.block_until_ready(
        convblock_forward(x, weight, bias, stride=1, padding=1, batch_parallel=True))
    assert jnp.allclose(out_fused, ref_bf16, rtol=1e-3, atol=1e-3), "fused path mismatch"
    assert jnp.allclose(out_grid, ref_bf16, rtol=1e-3, atol=1e-3), "grid path mismatch"
    assert jnp.allclose(out_fused, out_grid, rtol=1e-5, atol=1e-5), "fused vs grid mismatch"

    # Non-'same' configuration exercises the wrapper-im2col fallback kernel.
    out_s2 = jax.block_until_ready(
        convblock_forward(x, weight, bias, stride=2, padding=1))
    ref_s2 = _reference(x.astype(jnp.bfloat16).astype(jnp.float32),
                        weight.astype(jnp.bfloat16).astype(jnp.float32),
                        bias, stride=2, padding=1)
    assert out_s2.shape == ref_s2.shape
    assert jnp.allclose(out_s2, ref_s2, rtol=1e-3, atol=1e-3), "stride-2 fallback mismatch"

    print("KERNEL_OK")
</pallas_src>

<mosaic_0001>
module attributes {stable_mosaic.version = 11 : i64} {
  func.func @_convblock_same_kernel(%arg0: memref<8x36xbf16, #tpu.memory_space<vmem>>, %arg1: memref<4x512xf32, #tpu.memory_space<vmem>>, %arg2: memref<9x512xf32, #tpu.memory_space<vmem>>, %arg3: memref<2x8x256xf32, #tpu.memory_space<vmem>>, %arg4: memref<36x512xf32, #tpu.memory_space<vmem>>) attributes {dimension_semantics = [], scalar_prefetch = 0 : i64, scratch_operands = 1 : i64, tpu.core_type = #tpu.core_type<tc>} {
    %c0 = arith.constant 0 : index
    %c0_0 = arith.constant 0 : index
    %0 = vector.load %arg1[%c0, %c0_0] : memref<4x512xf32, #tpu.memory_space<vmem>>, vector<4x512xf32>
    %c17_i32 = arith.constant 17 : i32
    %1 = tpu.dynamic_rotate %0 by %c17_i32 dim 1 : vector<4x512xf32>, i32 -> vector<4x512xf32>
    %c0_1 = arith.constant 0 : index
    %c0_2 = arith.constant 0 : index
    %2 = vector.load %arg2[%c0_1, %c0_2] : memref<9x512xf32, #tpu.memory_space<vmem>>, vector<1x512xf32>
    %3 = vector.broadcast %2 : vector<1x512xf32> to vector<4x512xf32>
    %4 = arith.mulf %1, %3 : vector<4x512xf32>
    %c0_3 = arith.constant 0 : index
    %c0_4 = arith.constant 0 : index
    %5 = vector.load %arg4[%c0_3, %c0_4] : memref<36x512xf32, #tpu.memory_space<vmem>>, vector<4x512xf32>
    tpu.vector_store %arg4[%c0_3, %c0_4], %4 {strides = array<i32>} : memref<36x512xf32, #tpu.memory_space<vmem>>, vector<4x512xf32>,
    %c16_i32 = arith.constant 16 : i32
    %6 = tpu.dynamic_rotate %0 by %c16_i32 dim 1 : vector<4x512xf32>, i32 -> vector<4x512xf32>
    %c1 = arith.constant 1 : index
    %c0_5 = arith.constant 0 : index
    %7 = vector.load %arg2[%c1, %c0_5] : memref<9x512xf32, #tpu.memory_space<vmem>>, vector<1x512xf32>
    %8 = vector.broadcast %7 : vector<1x512xf32> to vector<4x512xf32>
    %9 = arith.mulf %6, %8 : vector<4x512xf32>
    %c4 = arith.constant 4 : index
    %c0_6 = arith.constant 0 : index
    %10 = vector.load %arg4[%c4, %c0_6] : memref<36x512xf32, #tpu.memory_space<vmem>>, vector<4x512xf32>
    tpu.vector_store %arg4[%c4, %c0_6], %9 {strides = array<i32>} : memref<36x512xf32, #tpu.memory_space<vmem>>, vector<4x512xf32>,
    %c15_i32 = arith.constant 15 : i32
    %11 = tpu.dynamic_rotate %0 by %c15_i32 dim 1 : vector<4x512xf32>, i32 -> vector<4x512xf32>
    %c2 = arith.constant 2 : index
    %c0_7 = arith.constant 0 : index
    %12 = vector.load %arg2[%c2, %c0_7] : memref<9x512xf32, #tpu.memory_space<vmem>>, vector<1x512xf32>
    %13 = vector.broadcast %12 : vector<1x512xf32> to vector<4x512xf32>
    %14 = arith.mulf %11, %13 : vector<4x512xf32>
    %c8 = arith.constant 8 : index
    %c0_8 = arith.constant 0 : index
    %15 = vector.load %arg4[%c8, %c0_8] : memref<36x512xf32, #tpu.memory_space<vmem>>, vector<4x512xf32>
    tpu.vector_store %arg4[%c8, %c0_8], %14 {strides = array<i32>} : memref<36x512xf32, #tpu.memory_space<vmem>>, vector<4x512xf32>,
    %c1_i32 = arith.constant 1 : i32
    %16 = tpu.dynamic_rotate %0 by %c1_i32 dim 1 : vector<4x512xf32>, i32 -> vector<4x512xf32>
    %c3 = arith.constant 3 : index
    %c0_9 = arith.constant 0 : index
    %17 = vector.load %arg2[%c3, %c0_9] : memref<9x512xf32, #tpu.memory_space<vmem>>, vector<1x512xf32>
    %18 = vector.broadcast %17 : vector<1x512xf32> to vector<4x512xf32>
    %19 = arith.mulf %16, %18 : vector<4x512xf32>
    %c12 = arith.constant 12 : index
    %c0_10 = arith.constant 0 : index
    %20 = vector.load %arg4[%c12, %c0_10] : memref<36x512xf32, #tpu.memory_space<vmem>>, vector<4x512xf32>
    tpu.vector_store %arg4[%c12, %c0_10], %19 {strides = array<i32>} : memref<36x512xf32, #tpu.memory_space<vmem>>, vector<4x512xf32>,
    %c4_11 = arith.constant 4 : index
    %c0_12 = arith.constant 0 : index
    %21 = vector.load %arg2[%c4_11, %c0_12] : memref<9x512xf32, #tpu.memory_space<vmem>>, vector<1x512xf32>
    %22 = vector.broadcast %21 : vector<1x512xf32> to vector<4x512xf32>
    %23 = arith.mulf %0, %22 : vector<4x512xf32>
    %c16 = arith.constant 16 : index
    %c0_13 = arith.constant 0 : index
    %24 = vector.load %arg4[%c16, %c0_13] : memref<36x512xf32, #tpu.memory_space<vmem>>, vector<4x512xf32>
    tpu.vector_store %arg4[%c16, %c0_13], %23 {strides = array<i32>} : memref<36x512xf32, #tpu.memory_space<vmem>>, vector<4x512xf32>,
    %c511_i32 = arith.constant 511 : i32
    %25 = tpu.dynamic_rotate %0 by %c511_i32 dim 1 : vector<4x512xf32>, i32 -> vector<4x512xf32>
    %c5 = arith.constant 5 : index
    %c0_14 = arith.constant 0 : index
    %26 = vector.load %arg2[%c5, %c0_14] : memref<9x512xf32, #tpu.memory_space<vmem>>, vector<1x512xf32>
    %27 = vector.broadcast %26 : vector<1x512xf32> to vector<4x512xf32>
    %28 = arith.mulf %25, %27 : vector<4x512xf32>
    %c20 = arith.constant 20 : index
    %c0_15 = arith.constant 0 : index
    %29 = vector.load %arg4[%c20, %c0_15] : memref<36x512xf32, #tpu.memory_space<vmem>>, vector<4x512xf32>
    tpu.vector_store %arg4[%c20, %c0_15], %28 {strides = array<i32>} : memref<36x512xf32, #tpu.memory_space<vmem>>, vector<4x512xf32>,
    %c497_i32 = arith.constant 497 : i32
    %30 = tpu.dynamic_rotate %0 by %c497_i32 dim 1 : vector<4x512xf32>, i32 -> vector<4x512xf32>
    %c6 = arith.constant 6 : index
    %c0_16 = arith.constant 0 : index
    %31 = vector.load %arg2[%c6, %c0_16] : memref<9x512xf32, #tpu.memory_space<vmem>>, vector<1x512xf32>
    %32 = vector.broadcast %31 : vector<1x512xf32> to vector<4x512xf32>
    %33 = arith.mulf %30, %32 : vector<4x512xf32>
    %c24 = arith.constant 24 : index
    %c0_17 = arith.constant 0 : index
    %34 = vector.load %arg4[%c24, %c0_17] : memref<36x512xf32, #tpu.memory_space<vmem>>, vector<4x512xf32>
    tpu.vector_store %arg4[%c24, %c0_17], %33 {strides = array<i32>} : memref<36x512xf32, #tpu.memory_space<vmem>>, vector<4x512xf32>,
    %c496_i32 = arith.constant 496 : i32
    %35 = tpu.dynamic_rotate %0 by %c496_i32 dim 1 : vector<4x512xf32>, i32 -> vector<4x512xf32>
    %c7 = arith.constant 7 : index
    %c0_18 = arith.constant 0 : index
    %36 = vector.load %arg2[%c7, %c0_18] : memref<9x512xf32, #tpu.memory_space<vmem>>, vector<1x512xf32>
    %37 = vector.broadcast %36 : vector<1x512xf32> to vector<4x512xf32>
    %38 = arith.mulf %35, %37 : vector<4x512xf32>
    %c28 = arith.constant 28 : index
    %c0_19 = arith.constant 0 : index
    %39 = vector.load %arg4[%c28, %c0_19] : memref<36x512xf32, #tpu.memory_space<vmem>>, vector<4x512xf32>
    tpu.vector_store %arg4[%c28, %c0_19], %38 {strides = array<i32>} : memref<36x512xf32, #tpu.memory_space<vmem>>, vector<4x512xf32>,
    %c495_i32 = arith.constant 495 : i32
    %40 = tpu.dynamic_rotate %0 by %c495_i32 dim 1 : vector<4x512xf32>, i32 -> vector<4x512xf32>
    %c8_20 = arith.constant 8 : index
    %c0_21 = arith.constant 0 : index
    %41 = vector.load %arg2[%c8_20, %c0_21] : memref<9x512xf32, #tpu.memory_space<vmem>>, vector<1x512xf32>
    %42 = vector.broadcast %41 : vector<1x512xf32> to vector<4x512xf32>
    %43 = arith.mulf %40, %42 : vector<4x512xf32>
    %c32 = arith.constant 32 : index
    %c0_22 = arith.constant 0 : index
    %44 = vector.load %arg4[%c32, %c0_22] : memref<36x512xf32, #tpu.memory_space<vmem>>, vector<4x512xf32>
    tpu.vector_store %arg4[%c32, %c0_22], %43 {strides = array<i32>} : memref<36x512xf32, #tpu.memory_space<vmem>>, vector<4x512xf32>,
    %c0_23 = arith.constant 0 : index
    %c0_24 = arith.constant 0 : index
    %45 = vector.load %arg4[%c0_23, %c0_24] : memref<36x512xf32, #tpu.memory_space<vmem>>, vector<36x512xf32>
    %46 = arith.truncf %45 : vector<36x512xf32> to vector<36x512xbf16>
    %c0_25 = arith.constant 0 : index
    %c0_26 = arith.constant 0 : index
    %47 = vector.load %arg0[%c0_25, %c0_26] : memref<8x36xbf16, #tpu.memory_space<vmem>>, vector<8x36xbf16>
    %cst = arith.constant dense<0.000000e+00> : vector<8x512xf32>
    %48 = tpu.matmul %47, %46, %cst {dimension_numbers = #tpu.dot_dimension_numbers<[1], [0], [0], [1], [0, 0, 1, 1], [], []>} : vector<8x36xbf16>, vector<36x512xbf16>, vector<8x512xf32> -> vector<8x512xf32>
    %49 = vector.extract_strided_slice %48 {offsets = [0, 0], sizes = [8, 256], strides = [1, 1]} : vector<8x512xf32> to vector<8x256xf32>
    %cst_27 = arith.constant dense<0.000000e+00> : vector<8xf32>
    %50 = vector.multi_reduction <add>, %49, %cst_27 [1] : vector<8x256xf32> to vector<8xf32>
    %51 = vector.shape_cast %50 : vector<8xf32> to vector<8x1xf32>
    %cst_28 = arith.constant 3.906250e-03 : f32
    %52 = vector.broadcast %cst_28 : f32 to vector<8x1xf32>
    %53 = arith.mulf %51, %52 : vector<8x1xf32>
    %54 = vector.broadcast %53 : vector<8x1xf32> to vector<8x256xf32>
    %55 = arith.subf %49, %54 : vector<8x256xf32>
    %56 = arith.mulf %55, %55 : vector<8x256xf32>
    %cst_29 = arith.constant dense<0.000000e+00> : vector<8xf32>
    %57 = vector.multi_reduction <add>, %56, %cst_29 [1] : vector<8x256xf32> to vector<8xf32>
    %58 = vector.shape_cast %57 : vector<8xf32> to vector<8x1xf32>
    %cst_30 = arith.constant 3.906250e-03 : f32
    %59 = vector.broadcast %cst_30 : f32 to vector<8x1xf32>
    %60 = arith.mulf %58, %59 : vector<8x1xf32>
    %cst_31 = arith.constant 9.99999974E-6 : f32
    %61 = vector.broadcast %cst_31 : f32 to vector<8x1xf32>
    %62 = arith.addf %60, %61 : vector<8x1xf32>
    %63 = math.rsqrt %62 : vector<8x1xf32>
    %64 = vector.broadcast %63 : vector<8x1xf32> to vector<8x256xf32>
    %65 = arith.mulf %55, %64 : vector<8x256xf32>
    %cst_32 = arith.constant 2.000000e-01 : f32
    %66 = vector.broadcast %cst_32 : f32 to vector<8x256xf32>
    %67 = arith.mulf %66, %65 : vector<8x256xf32>
    %68 = arith.maximumf %65, %67 : vector<8x256xf32>
    %c0_33 = arith.constant 0 : index
    %c0_34 = arith.constant 0 : index
    %c0_35 = arith.constant 0 : index
    %69 = vector.load %arg3[%c0_33, %c0_34, %c0_35] : memref<2x8x256xf32, #tpu.memory_space<vmem>>, vector<1x8x256xf32>
    %70 = vector.shape_cast %69 : vector<1x8x256xf32> to vector<8x256xf32>
    %71 = vector.shape_cast %68 : vector<8x256xf32> to vector<1x8x256xf32>
    tpu.vector_store %arg3[%c0_33, %c0_34, %c0_35], %71 {strides = array<i32>} : memref<2x8x256xf32, #tpu.memory_space<vmem>>, vector<1x8x256xf32>,
    %72 = vector.extract_strided_slice %48 {offsets = [0, 256], sizes = [8, 256], strides = [1, 1]} : vector<8x512xf32> to vector<8x256xf32>
    %cst_36 = arith.constant dense<0.000000e+00> : vector<8xf32>
    %73 = vector.multi_reduction <add>, %72, %cst_36 [1] : vector<8x256xf32> to vector<8xf32>
    %74 = vector.shape_cast %73 : vector<8xf32> to vector<8x1xf32>
    %cst_37 = arith.constant 3.906250e-03 : f32
    %75 = vector.broadcast %cst_37 : f32 to vector<8x1xf32>
    %76 = arith.mulf %74, %75 : vector<8x1xf32>
    %77 = vector.broadcast %76 : vector<8x1xf32> to vector<8x256xf32>
    %78 = arith.subf %72, %77 : vector<8x256xf32>
    %79 = arith.mulf %78, %78 : vector<8x256xf32>
    %cst_38 = arith.constant dense<0.000000e+00> : vector<8xf32>
    %80 = vector.multi_reduction <add>, %79, %cst_38 [1] : vector<8x256xf32> to vector<8xf32>
    %81 = vector.shape_cast %80 : vector<8xf32> to vector<8x1xf32>
    %cst_39 = arith.constant 3.906250e-03 : f32
    %82 = vector.broadcast %cst_39 : f32 to vector<8x1xf32>
    %83 = arith.mulf %81, %82 : vector<8x1xf32>
    %cst_40 = arith.constant 9.99999974E-6 : f32
    %84 = vector.broadcast %cst_40 : f32 to vector<8x1xf32>
    %85 = arith.addf %83, %84 : vector<8x1xf32>
    %86 = math.rsqrt %85 : vector<8x1xf32>
    %87 = vector.broadcast %86 : vector<8x1xf32> to vector<8x256xf32>
    %88 = arith.mulf %78, %87 : vector<8x256xf32>
    %cst_41 = arith.constant 2.000000e-01 : f32
    %89 = vector.broadcast %cst_41 : f32 to vector<8x256xf32>
    %90 = arith.mulf %89, %88 : vector<8x256xf32>
    %91 = arith.maximumf %88, %90 : vector<8x256xf32>
    %c1_42 = arith.constant 1 : index
    %c0_43 = arith.constant 0 : index
    %c0_44 = arith.constant 0 : index
    %92 = vector.load %arg3[%c1_42, %c0_43, %c0_44] : memref<2x8x256xf32, #tpu.memory_space<vmem>>, vector<1x8x256xf32>
    %93 = vector.shape_cast %92 : vector<1x8x256xf32> to vector<8x256xf32>
    %94 = vector.shape_cast %91 : vector<8x256xf32> to vector<1x8x256xf32>
    tpu.vector_store %arg3[%c1_42, %c0_43, %c0_44], %94 {strides = array<i32>} : memref<2x8x256xf32, #tpu.memory_space<vmem>>, vector<1x8x256xf32>,
    return
  }
}

</mosaic_0001>

<llo_original>
// kernel: tpu_custom_call.1
$region0: #{tpu_custom_call.1}
  #allocation0 [shape = 'u32[]', space=smem, size = 0x4, offset = 0x4, fixed_abs, tag = 'smem constant byte address 0x4 - core index']
  #allocation1 [shape = 'u32[72,128]{1,0:T(1,128)}', space=vmem, size = 0x9000, scoped, tag = 'internal scratch']
  #allocation2 [shape = 'f32[36,512]{1,0:T(8,128)}', space=vmem, size = 0x14000, scoped, tag = 'scratch operand']
  %s0 = inlined_call_operand.hbm [shape: bf16[8,36], index: 0, kind: input, shape index: {}]
  %s1 = inlined_call_operand.hbm [shape: f32[4,512], index: 1, kind: input, shape index: {}]
  %s2 = inlined_call_operand.hbm [shape: f32[9,512], index: 2, kind: input, shape index: {}]
  %s3 = inlined_call_operand.hbm [shape: f32[2,8,256], index: 3, kind: output, shape index: {}]
  %s4 = sld [smem:[#allocation0]]
  $region34: #{tpu_custom_call.1} parent=0
    _
  %s6 = ssub.s32 1, %s4
  %s7 = scalar_select 0, %s6, %s4
  $region1: #{tpu_custom_call.1} parent=0
    #allocation3 [shape = 'u8[2048]{0}', space=vmem, size = 0x800, scoped, tag = 'input window, operand 0, single buffered']
    #allocation4 [shape = 's32[1]{0}', space=sflag, size = 0x4, scoped, tag = 'scoped memory for tpu_custom_call.1']
    #allocation5 [shape = 's32[1]{0}', space=sflag, size = 0x4, scoped, tag = 'scoped memory for tpu_custom_call.1']
    #allocation6 [shape = 'u8[8192]{0}', space=vmem, size = 0x2000, scoped, tag = 'input window, operand 1, single buffered']
    #allocation7 [shape = 's32[1]{0}', space=sflag, size = 0x4, scoped, tag = 'scoped memory for tpu_custom_call.1']
    #allocation8 [shape = 'u8[32768]{0}', space=vmem, size = 0x8000, scoped, tag = 'input window, operand 2, single buffered']
    #allocation9 [shape = 'u8[16384]{0}', space=vmem, size = 0x4000, scoped, tag = 'output window, operand 0, single buffered']
    %8 = vsyncpa [#allocation4], 0
    %9 = vsyncpa [#allocation7], 0
    %10 = vsyncpa [#allocation5], 0
    // Predicated region
    $region2: #{tpu_custom_call.1} parent=1 // pred_check
      _
    $region3: #{tpu_custom_call.1} parent=1 // pred_check_branch
      %12 = sbr.rel (0) target = $region5
    $region4: #{tpu_custom_call.1} parent=1 // pred_region
      %14 = vsyncadd [#allocation4], 0
      %s16 = sshll.u32 %s0, 4
      %s17 = int_to_ptr.hbm [resolvable:$true] %s16
      %s18 = sshll.u32 [#allocation3], 4
      %s19 = int_to_ptr.vmem [resolvable:$true] %s18
      %21 = dma.hbm_to_vmem [thread:$0]  %s17, 64, %s19, [#allocation4]
    $region5: #{tpu_custom_call.1} parent=1 // pred_fallthru
      _
    // Predicated region
    $region6: #{tpu_custom_call.1} parent=1 // pred_check
      _
    $region7: #{tpu_custom_call.1} parent=1 // pred_check_branch
      %23 = sbr.rel (0) target = $region9
    $region8: #{tpu_custom_call.1} parent=1 // pred_region
      %25 = vsyncadd [#allocation7], 0
      %s27 = sshll.u32 %s1, 4
      %s28 = int_to_ptr.hbm [resolvable:$true] %s27
      %s29 = sshll.u32 [#allocation6], 4
      %s30 = int_to_ptr.vmem [resolvable:$true] %s29
      %32 = dma.hbm_to_vmem [thread:$0]  %s28, 256, %s30, [#allocation7]
    $region9: #{tpu_custom_call.1} parent=1 // pred_fallthru
      _
    // Predicated region
    $region10: #{tpu_custom_call.1} parent=1 // pred_check
      _
    $region11: #{tpu_custom_call.1} parent=1 // pred_check_branch
      %34 = sbr.rel (0) target = $region13
    $region12: #{tpu_custom_call.1} parent=1 // pred_region
      %36 = vsyncadd [#allocation7], 0
      %s37 = sshll.u32 %s2, 4
      %s38 = int_to_ptr.hbm [resolvable:$true] %s37
      %s39 = sshll.u32 [#allocation8], 4
      %s40 = int_to_ptr.vmem [resolvable:$true] %s39
      %45 = dma.hbm_to_vmem [thread:$0]  %s38, 1024, %s40, [#allocation7], 512, 512, 32
    $region13: #{tpu_custom_call.1} parent=1 // pred_fallthru
      _
    // Predicated region
    $region14: #{tpu_custom_call.1} parent=1 // pred_check
      _
    $region15: #{tpu_custom_call.1} parent=1 // pred_check_branch
      %47 = sbr.rel (0) target = $region17
    $region16: #{tpu_custom_call.1} parent=1 // pred_region
      %49 = dma.done [#allocation4], 64
    $region17: #{tpu_custom_call.1} parent=1 // pred_fallthru
      _
    // Predicated region
    $region18: #{tpu_custom_call.1} parent=1 // pred_check
      _
    $region19: #{tpu_custom_call.1} parent=1 // pred_check_branch
      %51 = sbr.rel (0) target = $region21
    $region20: #{tpu_custom_call.1} parent=1 // pred_region
      %53 = dma.done [#allocation7], 256
    $region21: #{tpu_custom_call.1} parent=1 // pred_fallthru
      _
    // Predicated region
    $region22: #{tpu_custom_call.1} parent=1 // pred_check
      _
    $region23: #{tpu_custom_call.1} parent=1 // pred_check_branch
      %55 = sbr.rel (0) target = $region25
    $region24: #{tpu_custom_call.1} parent=1 // pred_region
      %57 = dma.done [#allocation7], 1024
    $region25: #{tpu_custom_call.1} parent=1 // pred_fallthru
      _
    %v59 = vld [vmem:[#allocation6] sm:$0xff]
    %v60 = vld [vmem:[#allocation6 + $0x8] sm:$0xff]
    %63 = vst [vmem:[#allocation1] ss:$2 sm:$0xff] %v59
    %s64 = scalar_lea.vmem [#allocation1], 16
    %65 = vst [vmem:[%s64] ss:$2 sm:$0xff] %v60
    %v66 = vld.sshfl [vmem:[#allocation1] sm:$0xff pattern:$0x75316420]
    %v67 = vld.sshfl [vmem:[#allocation1 + $0x8] sm:$0xff pattern:$0x75316420]
    %v68 = vld.sshfl [vmem:[#allocation1 + $0x10] sm:$0xff pattern:$0x75316420]
    %v69 = vld.sshfl [vmem:[#allocation1 + $0x18] sm:$0xff pattern:$0x75316420]
    %74 = vrot.lane.b32.xlu0 %v66, 17
    %v75 = vpop.permute.xlu0 %74
    %76 = vrot.lane.b32.xlu0 %v67, 17
    %v77 = vpop.permute.xlu0 %76
    %78 = vrot.lane.b32.xlu0 %v68, 17
    %v79 = vpop.permute.xlu0 %78
    %80 = vrot.lane.b32.xlu0 %v69, 17
    %v81 = vpop.permute.xlu0 %80
    %v82 = vlaneseq
    %v83 = vand.u32 %v82, 127
    %vm84 = vcmp.lt.s32.totalorder %v83, 17
    %v85 = vsel %vm84, %v79, %v81
    %v86 = vsel %vm84, %v77, %v79
    %v87 = vsel %vm84, %v75, %v77
    %v88 = vsel %vm84, %v81, %v75
    %v89 = vld [vmem:[#allocation8] ss:$8 sm:$0xf]
    %v91 = vperm.slane %v89, 0
    %v92 = vperm.slane %v89, 1
    %v93 = vperm.slane %v89, 2
    %v94 = vperm.slane %v89, 3
    %v99 = vmul.f32 %v88, %v91
    %v100 = vmul.f32 %v87, %v92
    %v101 = vmul.f32 %v86, %v93
    %v102 = vmul.f32 %v85, %v94
    %103 = vst [vmem:[#allocation2] sm:$0xf] %v99
    %104 = vst [vmem:[#allocation2 + $0x8] sm:$0xf] %v100
    %105 = vst [vmem:[#allocation2 + $0x10] sm:$0xf] %v101
    %106 = vst [vmem:[#allocation2 + $0x18] sm:$0xf] %v102
    %107 = vst [vmem:[#allocation1] ss:$2 sm:$0xff] %v59
    %s108 = scalar_lea.vmem [#allocation1], 16
    %109 = vst [vmem:[%s108] ss:$2 sm:$0xff] %v60
    %v110 = vld.sshfl [vmem:[#allocation1] sm:$0xff pattern:$0x75316420]
    %v111 = vld.sshfl [vmem:[#allocation1 + $0x8] sm:$0xff pattern:$0x75316420]
    %v112 = vld.sshfl [vmem:[#allocation1 + $0x10] sm:$0xff pattern:$0x75316420]
    %v113 = vld.sshfl [vmem:[#allocation1 + $0x18] sm:$0xff pattern:$0x75316420]
    %118 = vrot.lane.b32.xlu0 %v110, 16
    %v119 = vpop.permute.xlu0 %118
    %120 = vrot.lane.b32.xlu0 %v111, 16
    %v121 = vpop.permute.xlu0 %120
    %122 = vrot.lane.b32.xlu0 %v112, 16
    %v123 = vpop.permute.xlu0 %122
    %124 = vrot.lane.b32.xlu0 %v113, 16
    %v125 = vpop.permute.xlu0 %124
    %vm126 = vcmp.lt.s32.totalorder %v83, 16
    %v127 = vsel %vm126, %v123, %v125
    %v128 = vsel %vm126, %v121, %v123
    %v129 = vsel %vm126, %v119, %v121
    %v130 = vsel %vm126, %v125, %v119
    %s131 = scalar_lea.vmem [#allocation8], 1
    %v132 = vld [vmem:[%s131] ss:$8 sm:$0xf]
    %v134 = vperm.slane %v132, 0
    %v135 = vperm.slane %v132, 1
    %v136 = vperm.slane %v132, 2
    %v137 = vperm.slane %v132, 3
    %v142 = vmul.f32 %v130, %v134
    %v143 = vmul.f32 %v129, %v135
    %v144 = vmul.f32 %v128, %v136
    %v145 = vmul.f32 %v127, %v137
    %v150 = vrot.slane %v142, 4
    %v151 = vrot.slane %v143, 4
    %v152 = vrot.slane %v144, 4
    %v153 = vrot.slane %v145, 4
    %158 = vst [vmem:[#allocation2] sm:$0xf0] %v150
    %159 = vst [vmem:[#allocation2 + $0x8] sm:$0xf0] %v151
    %160 = vst [vmem:[#allocation2 + $0x10] sm:$0xf0] %v152
    %161 = vst [vmem:[#allocation2 + $0x18] sm:$0xf0] %v153
    %162 = vst [vmem:[#allocation1] ss:$2 sm:$0xff] %v59
    %s163 = scalar_lea.vmem [#allocation1], 16
    %164 = vst [vmem:[%s163] ss:$2 sm:$0xff] %v60
    %v165 = vld.sshfl [vmem:[#allocation1] sm:$0xff pattern:$0x75316420]
    %v166 = vld.sshfl [vmem:[#allocation1 + $0x8] sm:$0xff pattern:$0x75316420]
    %v167 = vld.sshfl [vmem:[#allocation1 + $0x10] sm:$0xff pattern:$0x75316420]
    %v168 = vld.sshfl [vmem:[#allocation1 + $0x18] sm:$0xff pattern:$0x75316420]
    %173 = vrot.lane.b32.xlu0 %v165, 15
    %v174 = vpop.permute.xlu0 %173
    %175 = vrot.lane.b32.xlu0 %v166, 15
    %v176 = vpop.permute.xlu0 %175
    %177 = vrot.lane.b32.xlu0 %v167, 15
    %v178 = vpop.permute.xlu0 %177
    %179 = vrot.lane.b32.xlu0 %v168, 15
    %v180 = vpop.permute.xlu0 %179
    %vm181 = vcmp.lt.s32.totalorder %v83, 15
    %v182 = vsel %vm181, %v178, %v180
    %v183 = vsel %vm181, %v176, %v178
    %v184 = vsel %vm181, %v174, %v176
    %v185 = vsel %vm181, %v180, %v174
    %s186 = scalar_lea.vmem [#allocation8], 2
    %v187 = vld [vmem:[%s186] ss:$8 sm:$0xf]
    %v189 = vperm.slane %v187, 0
    %v190 = vperm.slane %v187, 1
    %v191 = vperm.slane %v187, 2
    %v192 = vperm.slane %v187, 3
    %v197 = vmul.f32 %v185, %v189
    %v198 = vmul.f32 %v184, %v190
    %v199 = vmul.f32 %v183, %v191
    %v200 = vmul.f32 %v182, %v192
    %201 = vst [vmem:[#allocation2 + $0x20] sm:$0xf] %v197
    %202 = vst [vmem:[#allocation2 + $0x28] sm:$0xf] %v198
    %203 = vst [vmem:[#allocation2 + $0x30] sm:$0xf] %v199
    %204 = vst [vmem:[#allocation2 + $0x38] sm:$0xf] %v200
    %205 = vst [vmem:[#allocation1] ss:$2 sm:$0xff] %v59
    %s206 = scalar_lea.vmem [#allocation1], 16
    %207 = vst [vmem:[%s206] ss:$2 sm:$0xff] %v60
    %v208 = vld.sshfl [vmem:[#allocation1] sm:$0xff pattern:$0x75316420]
    %v209 = vld.sshfl [vmem:[#allocation1 + $0x8] sm:$0xff pattern:$0x75316420]
    %v210 = vld.sshfl [vmem:[#allocation1 + $0x10] sm:$0xff pattern:$0x75316420]
    %v211 = vld.sshfl [vmem:[#allocation1 + $0x18] sm:$0xff pattern:$0x75316420]
    %216 = vrot.lane.b32.xlu0 %v208, 1
    %v217 = vpop.permute.xlu0 %216
    %218 = vrot.lane.b32.xlu0 %v209, 1
    %v219 = vpop.permute.xlu0 %218
    %220 = vrot.lane.b32.xlu0 %v210, 1
    %v221 = vpop.permute.xlu0 %220
    %222 = vrot.lane.b32.xlu0 %v211, 1
    %v223 = vpop.permute.xlu0 %222
    %vm224 = vcmp.lt.s32.totalorder %v83, 1
    %v225 = vsel %vm224, %v221, %v223
    %v226 = vsel %vm224, %v219, %v221
    %v227 = vsel %vm224, %v217, %v219
    %v228 = vsel %vm224, %v223, %v217
    %s229 = scalar_lea.vmem [#allocation8], 3
    %v230 = vld [vmem:[%s229] ss:$8 sm:$0xf]
    %v232 = vperm.slane %v230, 0
    %v233 = vperm.slane %v230, 1
    %v234 = vperm.slane %v230, 2
    %v235 = vperm.slane %v230, 3
    %v240 = vmul.f32 %v228, %v232
    %v241 = vmul.f32 %v227, %v233
    %v242 = vmul.f32 %v226, %v234
    %v243 = vmul.f32 %v225, %v235
    %v248 = vrot.slane %v240, 4
    %v249 = vrot.slane %v241, 4
    %v250 = vrot.slane %v242, 4
    %v251 = vrot.slane %v243, 4
    %256 = vst [vmem:[#allocation2 + $0x20] sm:$0xf0] %v248
    %257 = vst [vmem:[#allocation2 + $0x28] sm:$0xf0] %v249
    %258 = vst [vmem:[#allocation2 + $0x30] sm:$0xf0] %v250
    %259 = vst [vmem:[#allocation2 + $0x38] sm:$0xf0] %v251
    %s260 = scalar_lea.vmem [#allocation8], 4
    %v261 = vld [vmem:[%s260] ss:$8 sm:$0xf]
    %v263 = vperm.slane %v261, 0
    %v264 = vperm.slane %v261, 1
    %v265 = vperm.slane %v261, 2
    %v266 = vperm.slane %v261, 3
    %v267 = vrot.slane %v264, 4
    %v268 = vrot.slane %v266, 4
    %vm269 = vcmask 1043456
    %v270 = vsel %vm269, %v263, %v267
    %v271 = vsel %vm269, %v265, %v268
    %v274 = vmul.f32 %v59, %v270
    %v275 = vmul.f32 %v60, %v271
    %278 = vst [vmem:[#allocation1] ss:$2 sm:$0xff] %v274
    %s279 = scalar_lea.vmem [#allocation1], 16
    %280 = vst [vmem:[%s279] ss:$2 sm:$0xff] %v275
    %v281 = vld.sshfl [vmem:[#allocation1] sm:$0xff pattern:$0x75316420]
    %v282 = vld.sshfl [vmem:[#allocation1 + $0x8] sm:$0xff pattern:$0x75316420]
    %v283 = vld.sshfl [vmem:[#allocation1 + $0x10] sm:$0xff pattern:$0x75316420]
    %v284 = vld.sshfl [vmem:[#allocation1 + $0x18] sm:$0xff pattern:$0x75316420]
    %289 = vst [vmem:[#allocation2 + $0x40] sm:$0xf] %v281
    %290 = vst [vmem:[#allocation2 + $0x48] sm:$0xf] %v282
    %291 = vst [vmem:[#allocation2 + $0x50] sm:$0xf] %v283
    %292 = vst [vmem:[#allocation2 + $0x58] sm:$0xf] %v284
    %293 = vst [vmem:[#allocation1] ss:$2 sm:$0xff] %v59
    %s294 = scalar_lea.vmem [#allocation1], 16
    %295 = vst [vmem:[%s294] ss:$2 sm:$0xff] %v60
    %v296 = vld.sshfl [vmem:[#allocation1] sm:$0xff pattern:$0x75316420]
    %v297 = vld.sshfl [vmem:[#allocation1 + $0x8] sm:$0xff pattern:$0x75316420]
    %v298 = vld.sshfl [vmem:[#allocation1 + $0x10] sm:$0xff pattern:$0x75316420]
    %v299 = vld.sshfl [vmem:[#allocation1 + $0x18] sm:$0xff pattern:$0x75316420]
    %304 = vrot.lane.b32.xlu0 %v296, 127
    %v305 = vpop.permute.xlu0 %304
    %306 = vrot.lane.b32.xlu0 %v297, 127
    %v307 = vpop.permute.xlu0 %306
    %308 = vrot.lane.b32.xlu0 %v298, 127
    %v309 = vpop.permute.xlu0 %308
    %310 = vrot.lane.b32.xlu0 %v299, 127
    %v311 = vpop.permute.xlu0 %310
    %vm312 = vcmp.lt.s32.totalorder %v83, 127
    %v313 = vsel %vm312, %v309, %v311
    %v314 = vsel %vm312, %v307, %v309
    %v315 = vsel %vm312, %v305, %v307
    %v316 = vsel %vm312, %v311, %v305
    %s317 = scalar_lea.vmem [#allocation8], 5
    %v318 = vld [vmem:[%s317] ss:$8 sm:$0xf]
    %v320 = vperm.slane %v318, 0
    %v321 = vperm.slane %v318, 1
    %v322 = vperm.slane %v318, 2
    %v323 = vperm.slane %v318, 3
    %v328 = vmul.f32 %v315, %v320
    %v329 = vmul.f32 %v314, %v321
    %v330 = vmul.f32 %v313, %v322
    %v331 = vmul.f32 %v316, %v323
    %v336 = vrot.slane %v328, 4
    %v337 = vrot.slane %v329, 4
    %v338 = vrot.slane %v330, 4
    %v339 = vrot.slane %v331, 4
    %344 = vst [vmem:[#allocation2 + $0x40] sm:$0xf0] %v336
    %345 = vst [vmem:[#allocation2 + $0x48] sm:$0xf0] %v337
    %346 = vst [vmem:[#allocation2 + $0x50] sm:$0xf0] %v338
    %347 = vst [vmem:[#allocation2 + $0x58] sm:$0xf0] %v339
    %348 = vst [vmem:[#allocation1] ss:$2 sm:$0xff] %v59
    %s349 = scalar_lea.vmem [#allocation1], 16
    %350 = vst [vmem:[%s349] ss:$2 sm:$0xff] %v60
    %v351 = vld.sshfl [vmem:[#allocation1] sm:$0xff pattern:$0x75316420]
    %v352 = vld.sshfl [vmem:[#allocation1 + $0x8] sm:$0xff pattern:$0x75316420]
    %v353 = vld.sshfl [vmem:[#allocation1 + $0x10] sm:$0xff pattern:$0x75316420]
    %v354 = vld.sshfl [vmem:[#allocation1 + $0x18] sm:$0xff pattern:$0x75316420]
    %359 = vrot.lane.b32.xlu0 %v351, 113
    %v360 = vpop.permute.xlu0 %359
    %361 = vrot.lane.b32.xlu0 %v352, 113
    %v362 = vpop.permute.xlu0 %361
    %363 = vrot.lane.b32.xlu0 %v353, 113
    %v364 = vpop.permute.xlu0 %363
    %365 = vrot.lane.b32.xlu0 %v354, 113
    %v366 = vpop.permute.xlu0 %365
    %vm367 = vcmp.lt.s32.totalorder %v83, 113
    %v368 = vsel %vm367, %v364, %v366
    %v369 = vsel %vm367, %v362, %v364
    %v370 = vsel %vm367, %v360, %v362
    %v371 = vsel %vm367, %v366, %v360
    %s372 = scalar_lea.vmem [#allocation8], 6
    %v373 = vld [vmem:[%s372] ss:$8 sm:$0xf]
    %v375 = vperm.slane %v373, 0
    %v376 = vperm.slane %v373, 1
    %v377 = vperm.slane %v373, 2
    %v378 = vperm.slane %v373, 3
    %v383 = vmul.f32 %v370, %v375
    %v384 = vmul.f32 %v369, %v376
    %v385 = vmul.f32 %v368, %v377
    %v386 = vmul.f32 %v371, %v378
    %387 = vst [vmem:[#allocation2 + $0x60] sm:$0xf] %v383
    %388 = vst [vmem:[#allocation2 + $0x68] sm:$0xf] %v384
    %389 = vst [vmem:[#allocation2 + $0x70] sm:$0xf] %v385
    %390 = vst [vmem:[#allocation2 + $0x78] sm:$0xf] %v386
    %391 = vst [vmem:[#allocation1] ss:$2 sm:$0xff] %v59
    %s392 = scalar_lea.vmem [#allocation1], 16
    %393 = vst [vmem:[%s392] ss:$2 sm:$0xff] %v60
    %v394 = vld.sshfl [vmem:[#allocation1] sm:$0xff pattern:$0x75316420]
    %v395 = vld.sshfl [vmem:[#allocation1 + $0x8] sm:$0xff pattern:$0x75316420]
    %v396 = vld.sshfl [vmem:[#allocation1 + $0x10] sm:$0xff pattern:$0x75316420]
    %v397 = vld.sshfl [vmem:[#allocation1 + $0x18] sm:$0xff pattern:$0x75316420]
    %402 = vrot.lane.b32.xlu0 %v394, 112
    %v403 = vpop.permute.xlu0 %402
    %404 = vrot.lane.b32.xlu0 %v395, 112
    %v405 = vpop.permute.xlu0 %404
    %406 = vrot.lane.b32.xlu0 %v396, 112
    %v407 = vpop.permute.xlu0 %406
    %408 = vrot.lane.b32.xlu0 %v397, 112
    %v409 = vpop.permute.xlu0 %408
    %vm410 = vcmp.lt.s32.totalorder %v83, 112
    %v411 = vsel %vm410, %v407, %v409
    %v412 = vsel %vm410, %v405, %v407
    %v413 = vsel %vm410, %v403, %v405
    %v414 = vsel %vm410, %v409, %v403
    %s415 = scalar_lea.vmem [#allocation8], 7
    %v416 = vld [vmem:[%s415] ss:$8 sm:$0xf]
    %v418 = vperm.slane %v416, 0
    %v419 = vperm.slane %v416, 1
    %v420 = vperm.slane %v416, 2
    %v421 = vperm.slane %v416, 3
    %v426 = vmul.f32 %v413, %v418
    %v427 = vmul.f32 %v412, %v419
    %v428 = vmul.f32 %v411, %v420
    %v429 = vmul.f32 %v414, %v421
    %v434 = vrot.slane %v426, 4
    %v435 = vrot.slane %v427, 4
    %v436 = vrot.slane %v428, 4
    %v437 = vrot.slane %v429, 4
    %442 = vst [vmem:[#allocation2 + $0x60] sm:$0xf0] %v434
    %443 = vst [vmem:[#allocation2 + $0x68] sm:$0xf0] %v435
    %444 = vst [vmem:[#allocation2 + $0x70] sm:$0xf0] %v436
    %445 = vst [vmem:[#allocation2 + $0x78] sm:$0xf0] %v437
    %446 = vst [vmem:[#allocation1] ss:$2 sm:$0xff] %v59
    %s447 = scalar_lea.vmem [#allocation1], 16
    %448 = vst [vmem:[%s447] ss:$2 sm:$0xff] %v60
    %v449 = vld.sshfl [vmem:[#allocation1] sm:$0xff pattern:$0x75316420]
    %v450 = vld.sshfl [vmem:[#allocation1 + $0x8] sm:$0xff pattern:$0x75316420]
    %v451 = vld.sshfl [vmem:[#allocation1 + $0x10] sm:$0xff pattern:$0x75316420]
    %v452 = vld.sshfl [vmem:[#allocation1 + $0x18] sm:$0xff pattern:$0x75316420]
    %457 = vrot.lane.b32.xlu0 %v449, 111
    %v458 = vpop.permute.xlu0 %457
    %459 = vrot.lane.b32.xlu0 %v450, 111
    %v460 = vpop.permute.xlu0 %459
    %461 = vrot.lane.b32.xlu0 %v451, 111
    %v462 = vpop.permute.xlu0 %461
    %463 = vrot.lane.b32.xlu0 %v452, 111
    %v464 = vpop.permute.xlu0 %463
    %vm465 = vcmp.lt.s32.totalorder %v83, 111
    %v466 = vsel %vm465, %v462, %v464
    %v467 = vsel %vm465, %v460, %v462
    %v468 = vsel %vm465, %v458, %v460
    %v469 = vsel %vm465, %v464, %v458
    %s470 = scalar_lea.vmem [#allocation8], 32
    %v471 = vld [vmem:[%s470] ss:$8 sm:$0xf]
    %v473 = vperm.slane %v471, 0
    %v474 = vperm.slane %v471, 1
    %v475 = vperm.slane %v471, 2
    %v476 = vperm.slane %v471, 3
    %v481 = vmul.f32 %v468, %v473
    %v482 = vmul.f32 %v467, %v474
    %v483 = vmul.f32 %v466, %v475
    %v484 = vmul.f32 %v469, %v476
    %485 = vst [vmem:[#allocation2 + $0x80] sm:$0xf] %v481
    %486 = vst [vmem:[#allocation2 + $0x88] sm:$0xf] %v482
    %487 = vst [vmem:[#allocation2 + $0x90] sm:$0xf] %v483
    %488 = vst [vmem:[#allocation2 + $0x98] sm:$0xf] %v484
    %v489 = vld [vmem:[#allocation2] sm:$0xff]
    %v490 = vld [vmem:[#allocation2 + $0x8] sm:$0xff]
    %v491 = vld [vmem:[#allocation2 + $0x10] sm:$0xff]
    %v492 = vld [vmem:[#allocation2 + $0x18] sm:$0xff]
    %v493 = vld [vmem:[#allocation2 + $0x20] sm:$0xff]
    %v494 = vld [vmem:[#allocation2 + $0x28] sm:$0xff]
    %v495 = vld [vmem:[#allocation2 + $0x30] sm:$0xff]
    %v496 = vld [vmem:[#allocation2 + $0x38] sm:$0xff]
    %v497 = vld [vmem:[#allocation2 + $0x40] sm:$0xff]
    %v498 = vld [vmem:[#allocation2 + $0x48] sm:$0xff]
    %v499 = vld [vmem:[#allocation2 + $0x50] sm:$0xff]
    %v500 = vld [vmem:[#allocation2 + $0x58] sm:$0xff]
    %v501 = vld [vmem:[#allocation2 + $0x60] sm:$0xff]
    %v502 = vld [vmem:[#allocation2 + $0x68] sm:$0xff]
    %v503 = vld [vmem:[#allocation2 + $0x70] sm:$0xff]
    %v504 = vld [vmem:[#allocation2 + $0x78] sm:$0xff]
    %v505 = vld [vmem:[#allocation2 + $0x80] sm:$0xf]
    %v506 = vld [vmem:[#allocation2 + $0x88] sm:$0xf]
    %v507 = vld [vmem:[#allocation2 + $0x90] sm:$0xf]
    %v508 = vld [vmem:[#allocation2 + $0x98] sm:$0xf]
    %v509 = vpack.c.bf16 %v493, %v489
    %v510 = vpack.c.bf16 %v494, %v490
    %v511 = vpack.c.bf16 %v495, %v491
    %v512 = vpack.c.bf16 %v496, %v492
    %v513 = vpack.c.bf16 %v501, %v497
    %v514 = vpack.c.bf16 %v502, %v498
    %v515 = vpack.c.bf16 %v503, %v499
    %v516 = vpack.c.bf16 %v504, %v500
    %v517 = vpack.c.bf16 %v505, %v505
    %v518 = vpack.c.bf16 %v506, %v506
    %v519 = vpack.c.bf16 %v507, %v507
    %v520 = vpack.c.bf16 %v508, %v508
    %v521 = vld [vmem:[#allocation3] sm:$0xf]
    %vm522 = vcmask 293888
    %v524 = vsel %vm522, %v521, 0
    %vm526 = vcmask 1041408
    %v528 = vsel %vm526, %v517, 0
    %v531 = vsel %vm526, %v518, 0
    %v534 = vsel %vm526, %v519, 0
    %v537 = vsel %vm526, %v520, 0
    %539 = vmatpush.bf16.msra.mxu0 0
    %540 = vmatpush.bf16.msra.mxu0 0
    %541 = vmatpush.bf16.msra.mxu0 0
    %542 = vmatpush.bf16.msra.mxu0 0
    %543 = vmatpush.bf16.msra.mxu0 0
    %544 = vmatpush.bf16.msra.mxu0 %v528
    %545 = vmatpush.bf16.msra.mxu0 %v513
    %546 = vmatpush.bf16.msra.mxu0 %v509
    %547 = vmatmul.bf16.gmra.mxu0 %v524
    %v548 = vpop.f32.mrf.mxu0
    %v549 = vadd.f32 0.0, %v548
    %v550 = vpop.f32.mrf.mxu0
    %551 = vdwg.mxu0
    %552 = vmatpush.bf16.msra.mxu0 0
    %553 = vmatpush.bf16.msra.mxu0 0
    %554 = vmatpush.bf16.msra.mxu0 0
    %555 = vmatpush.bf16.msra.mxu0 0
    %556 = vmatpush.bf16.msra.mxu0 0
    %557 = vmatpush.bf16.msra.mxu0 %v531
    %558 = vmatpush.bf16.msra.mxu0 %v514
    %559 = vmatpush.bf16.msra.mxu0 %v510
    %560 = vmatmul.bf16.gmra.mxu0 %v524
    %v561 = vpop.f32.mrf.mxu0
    %v562 = vadd.f32 0.0, %v561
    %v563 = vpop.f32.mrf.mxu0
    %564 = vdwg.mxu0
    %565 = vmatpush.bf16.msra.mxu0 0
    %566 = vmatpush.bf16.msra.mxu0 0
    %567 = vmatpush.bf16.msra.mxu0 0
    %568 = vmatpush.bf16.msra.mxu0 0
    %569 = vmatpush.bf16.msra.mxu0 0
    %570 = vmatpush.bf16.msra.mxu0 %v534
    %571 = vmatpush.bf16.msra.mxu0 %v515
    %572 = vmatpush.bf16.msra.mxu0 %v511
    %573 = vmatmul.bf16.gmra.mxu0 %v524
    %v574 = vpop.f32.mrf.mxu0
    %v575 = vadd.f32 0.0, %v574
    %v576 = vpop.f32.mrf.mxu0
    %577 = vdwg.mxu0
    %578 = vmatpush.bf16.msra.mxu0 0
    %579 = vmatpush.bf16.msra.mxu0 0
    %580 = vmatpush.bf16.msra.mxu0 0
    %581 = vmatpush.bf16.msra.mxu0 0
    %582 = vmatpush.bf16.msra.mxu0 0
    %583 = vmatpush.bf16.msra.mxu0 %v537
    %584 = vmatpush.bf16.msra.mxu0 %v516
    %585 = vmatpush.bf16.msra.mxu0 %v512
    %586 = vmatmul.bf16.gmra.mxu0 %v524
    %v587 = vpop.f32.mrf.mxu0
    %v588 = vadd.f32 0.0, %v587
    %v589 = vpop.f32.mrf.mxu0
    %590 = vdwg.mxu0
    %v591 = vadd.f32 %v549, %v562
    %592 = vadd.xlane.f32.xlu0 %v591
    %v593 = vpop.xlane.xlu0 %592
    %v594 = vmul.f32 %v593, 0.00390625
    %v595 = vsub.f32 %v549, %v594
    %v596 = vsub.f32 %v562, %v594
    %v597 = vmul.f32 %v595, %v595
    %v598 = vmul.f32 %v596, %v596
    %v599 = vadd.f32 %v597, %v598
    %600 = vadd.xlane.f32.xlu0 %v599
    %v601 = vpop.xlane.xlu0 %600
    %v602 = vmul.f32 %v601, 0.00390625
    %v603 = vadd.f32 %v602, 1e-05
    %v604 = vrsqrt.pop %v603
    %v605 = vmul.f32 %v604, %v603
    %v606 = vmul.f32 %v605, %v604
    %v607 = vmul.f32 0.5, %v606
    %v608 = vsub.f32 1.5, %v607
    %v609 = vmul.f32 %v604, %v608
    %vm610 = vweird.f32 %v603
    %vm611 = vweird.f32 %v604
    %vm612 = vmor %vm610, %vm611
    %v613 = vsel %vm612, %v604, %v609
    %v614 = vmul.f32 %v595, %v613
    %v615 = vmul.f32 %v596, %v613
    %v616 = vmul.f32 %v614, 0.2
    %v617 = vmul.f32 %v615, 0.2
    %v618 = vmax.f32 %v614, %v616
    %v619 = vmax.f32 %v615, %v617
    %620 = vst [vmem:[#allocation9] sm:$0xff] %v618
    %621 = vst [vmem:[#allocation9 + $0x8] sm:$0xff] %v619
    %v622 = vadd.f32 %v575, %v588
    %623 = vadd.xlane.f32.xlu0 %v622
    %v624 = vpop.xlane.xlu0 %623
    %v625 = vmul.f32 %v624, 0.00390625
    %v626 = vsub.f32 %v575, %v625
    %v627 = vsub.f32 %v588, %v625
    %v628 = vmul.f32 %v626, %v626
    %v629 = vmul.f32 %v627, %v627
    %v630 = vadd.f32 %v628, %v629
    %631 = vadd.xlane.f32.xlu0 %v630
    %v632 = vpop.xlane.xlu0 %631
    %v633 = vmul.f32 %v632, 0.00390625
    %v634 = vadd.f32 %v633, 1e-05
    %v635 = vrsqrt.pop %v634
    %v636 = vmul.f32 %v635, %v634
    %v637 = vmul.f32 %v636, %v635
    %v638 = vmul.f32 0.5, %v637
    %v639 = vsub.f32 1.5, %v638
    %v640 = vmul.f32 %v635, %v639
    %vm641 = vweird.f32 %v634
    %vm642 = vweird.f32 %v635
    %vm643 = vmor %vm641, %vm642
    %v644 = vsel %vm643, %v635, %v640
    %v645 = vmul.f32 %v626, %v644
    %v646 = vmul.f32 %v627, %v644
    %v647 = vmul.f32 %v645, 0.2
    %v648 = vmul.f32 %v646, 0.2
    %v649 = vmax.f32 %v645, %v647
    %v650 = vmax.f32 %v646, %v648
    %s651 = scalar_lea.vmem [#allocation9], 16
    %652 = vst [vmem:[%s651] sm:$0xff] %v649
    %653 = vst [vmem:[%s651 + $0x8] sm:$0xff] %v650
    // Predicated region
    $region26: #{tpu_custom_call.1} parent=1 // pred_check
      _
    $region27: #{tpu_custom_call.1} parent=1 // pred_check_branch
      %655 = sbr.rel (0) target = $region29
    $region28: #{tpu_custom_call.1} parent=1 // pred_region
      %657 = vsyncadd [#allocation5], 0
      %s658 = sshll.u32 [#allocation9], 4
      %s659 = int_to_ptr.vmem [resolvable:$true] %s658
      %s660 = sshll.u32 %s3, 4
      %s661 = int_to_ptr.hbm [resolvable:$true] %s660
      %666 = dma.vmem_to_hbm [thread:$0]  %s659, 512, %s661, [#allocation5], 256, 256, 16
    $region29: #{tpu_custom_call.1} parent=1 // pred_fallthru
      _
    // Predicated region
    $region30: #{tpu_custom_call.1} parent=1 // pred_check
      _
    $region31: #{tpu_custom_call.1} parent=1 // pred_check_branch
      %668 = sbr.rel (0) target = $region33
    $region32: #{tpu_custom_call.1} parent=1 // pred_region
      %670 = dma.done [#allocation5], 512
    $region33: #{tpu_custom_call.1} parent=1 // pred_fallthru
      _
    %671 = vsyncpa [#allocation4], 1
    %672 = vsyncpa [#allocation7], 1
    %673 = vsyncpa [#allocation5], 1

</llo_original>
